<compile_context>
chip_gen: v7x
topology: tpu7x:2x2x1
jax: 0.10.0
libtpu: 0.0.40
codegen_flags: <defaults>
</compile_context>

<pallas_src>
import jax
import jax.numpy as jnp
from jax.experimental import pallas as pl
from jax.experimental.pallas import tpu as pltpu


def _padding_mask_kernel(lengths_ref, mask_ref):
    """One (blk_b, blk_s) tile of the padding mask: 1 where pos >= length."""
    blk_b, blk_s = mask_ref.shape
    # Global lane position of this tile (tile-local iota + tile origin).
    col0 = pl.program_id(1) * blk_s
    pos = col0 + jax.lax.broadcasted_iota(jnp.int32, (blk_b, blk_s), 1)
    lengths = lengths_ref[...]                       # (blk_b, 1) broadcasts over lanes
    mask_ref[...] = (pos >= lengths).astype(jnp.int8)


def _padding_mask_pallas(lengths_2d, batch, src_len, block_b, block_s):
    # Clamp block sizes: a block equal to the full dim is exempt from the
    # (8, 128) divisibility rule; otherwise the defaults (multiples of 8 / 128)
    # keep the mask stores as full, unmasked vst's.
    blk_b = min(block_b, batch)
    blk_s = min(block_s, src_len)
    grid = (pl.cdiv(batch, blk_b), pl.cdiv(src_len, blk_s))

    return pl.pallas_call(
        _padding_mask_kernel,
        out_shape=jax.ShapeDtypeStruct((batch, src_len), jnp.int8),
        grid_spec=pl.GridSpec(
            grid=grid,
            in_specs=[pl.BlockSpec((blk_b, 1), lambda i, j: (i, 0))],
            out_specs=pl.BlockSpec((blk_b, blk_s), lambda i, j: (i, j)),
        ),
        compiler_params=pltpu.CompilerParams(
            dimension_semantics=("parallel", "parallel")),
    )(lengths_2d)


def fairseq_encoder_forward(src_tokens, src_lengths=None, *,
                            block_b=256, block_s=2048, use_pallas=None):
    """JAX equivalent of FairseqEncoder.forward (maximal faithful version).

    Args:
      src_tokens : int32 (batch, src_len)
      src_lengths: int32 (batch,) or None
      block_b, block_s: mask tile sizes (sublane / lane).  Defaults give a
        ~0.5 MiB int8 output tile -> ~1 MiB double-buffered, safe on every
        generation including v7x's 64 MiB VMEM.
      use_pallas : force/skip the Pallas path; by default tiny inputs fall
        back to plain XLA (the pallas_call launch cost dominates there).
    Returns:
      encoder_out          : int32 (batch, src_len)  -- pass-through tokens
      encoder_padding_mask : int8  (batch, src_len)  -- 1 where padded
                             (None when src_lengths is None)
    """
    batch, src_len = src_tokens.shape
    if src_lengths is None:
        return src_tokens, None

    lengths_2d = src_lengths.astype(jnp.int32).reshape(batch, 1)

    if use_pallas is None:
        use_pallas = batch * src_len >= 8 * 128
    if not use_pallas:
        mask = (jnp.arange(src_len, dtype=jnp.int32)[None, :]
                >= lengths_2d).astype(jnp.int8)
        return src_tokens, mask

    mask = _padding_mask_pallas(lengths_2d, batch, src_len, block_b, block_s)
    return src_tokens, mask


def max_positions():
    """Maximum input length supported by the encoder."""
    return 1000000.0


if __name__ == "__main__":
    key = jax.random.PRNGKey(0)
    k_tok, k_len, k_tok2, k_len2 = jax.random.split(key, 4)

    # --- Small demo shape (forced through the Pallas path: one full block) ---
    batch, src_len = 2, 8
    src_tokens = jax.random.randint(k_tok, (batch, src_len), 0, 100, dtype=jnp.int32)
    src_lengths = jax.random.randint(k_len, (batch,), 1, src_len + 1, dtype=jnp.int32)

    encoder_out, padding_mask = fairseq_encoder_forward(
        src_tokens, src_lengths, use_pallas=True)
    jax.block_until_ready((encoder_out, padding_mask))

    ref_mask = (jnp.arange(src_len)[None, :] >= src_lengths[:, None]).astype(jnp.int8)
    assert jnp.array_equal(encoder_out, src_tokens)
    assert jnp.array_equal(padding_mask, ref_mask)

    # --- Multi-tile grid check (program_id lane offset + partial edge tile) ---
    batch2, src_len2 = 16, 320
    tok2 = jax.random.randint(k_tok2, (batch2, src_len2), 0, 100, dtype=jnp.int32)
    len2 = jax.random.randint(k_len2, (batch2,), 1, src_len2 + 1, dtype=jnp.int32)

    enc2, mask2 = fairseq_encoder_forward(
        tok2, len2, block_b=8, block_s=128, use_pallas=True)
    jax.block_until_ready((enc2, mask2))

    ref2 = (jnp.arange(src_len2)[None, :] >= len2[:, None]).astype(jnp.int8)
    assert jnp.array_equal(enc2, tok2)
    assert jnp.array_equal(mask2, ref2)

    print("KERNEL_OK")
</pallas_src>

<mosaic_0001>
module attributes {stable_mosaic.version = 11 : i64} {
  func.func @_padding_mask_kernel(%arg0: i32, %arg1: i32, %arg2: memref<2x1xi32, #tpu.memory_space<vmem>>, %arg3: memref<2x8xi8, #tpu.memory_space<vmem>>) attributes {dimension_semantics = [#tpu.dimension_semantics<parallel>, #tpu.dimension_semantics<parallel>], iteration_bounds = array<i64: 1, 1>, scalar_prefetch = 0 : i64, scratch_operands = 0 : i64, tpu.core_type = #tpu.core_type<tc>, window_params = [{transform_indices = @transform_0, window_bounds = array<i64: 2, 1>}, {transform_indices = @transform_1, window_bounds = array<i64: 2, 8>}]} {
    %c8_i32 = arith.constant 8 : i32
    %0 = arith.muli %arg1, %c8_i32 : i32
    %1 = tpu.iota {dimensions = array<i32: 1>} : vector<2x8xi32>
    %2 = vector.broadcast %0 : i32 to vector<2x8xi32>
    %3 = arith.addi %2, %1 : vector<2x8xi32>
    %c0 = arith.constant 0 : index
    %c0_0 = arith.constant 0 : index
    %4 = vector.load %arg2[%c0, %c0_0] : memref<2x1xi32, #tpu.memory_space<vmem>>, vector<2x1xi32>
    %5 = vector.broadcast %4 : vector<2x1xi32> to vector<2x8xi32>
    %6 = arith.cmpi sge, %3, %5 : vector<2x8xi32>
    %7 = arith.extui %6 : vector<2x8xi1> to vector<2x8xi8>
    %c0_1 = arith.constant 0 : index
    %c0_2 = arith.constant 0 : index
    %8 = vector.load %arg3[%c0_1, %c0_2] : memref<2x8xi8, #tpu.memory_space<vmem>>, vector<2x8xi8>
    tpu.vector_store %arg3[%c0_1, %c0_2], %7 {strides = array<i32>} : memref<2x8xi8, #tpu.memory_space<vmem>>, vector<2x8xi8>,
    return
  }
  func.func @transform_0(%arg0: i32, %arg1: i32) -> (i32, i32) {
    %c0_i32 = arith.constant 0 : i32
    %c0_i32_0 = arith.constant 0 : i32
    return %arg0, %c0_i32 : i32, i32
  }
  func.func @transform_1(%arg0: i32, %arg1: i32) -> (i32, i32) {
    %c0_i32 = arith.constant 0 : i32
    return %arg0, %arg1 : i32, i32
  }
}

</mosaic_0001>

<llo_original>
// kernel: tpu_custom_call.1
$region0: #{tpu_custom_call.1}
  #allocation0 [shape = 'u32[]', space=smem, size = 0x4, offset = 0x4, fixed_abs, tag = 'smem constant byte address 0x4 - core index']
  #allocation1 [shape = 'u32[144,128]{1,0:T(1,128)}', space=vmem, size = 0x12000, scoped, tag = 'internal scratch']
  %s0 = inlined_call_operand.vmem [shape: s32[2,1], index: 0, kind: input, shape index: {}]
  %s1 = inlined_call_operand.hbm [shape: s8[2,8], index: 1, kind: output, shape index: {}]
  %s2 = sld [smem:[#allocation0]]
  $region14: #{tpu_custom_call.1} parent=0
    _
  %s4 = ssub.s32 1, %s2
  %s5 = scalar_select 0, %s4, %s2
  $region1: #{tpu_custom_call.1} parent=0
    #allocation2 [shape = 'u8[512]{0}', space=vmem, size = 0x400, scoped, tag = 'output window, operand 0, single buffered']
    #allocation3 [shape = 's32[1]{0}', space=sflag, size = 0x4, scoped, tag = 'scoped memory for tpu_custom_call.1']
    %6 = vsyncpa [#allocation3], 0
    // Predicated region
    $region2: #{tpu_custom_call.1} parent=1 // pred_check
      _
    $region3: #{tpu_custom_call.1} parent=1 // pred_check_branch
      %8 = sbr.rel (0) target = $region5
    $region4: #{tpu_custom_call.1} parent=1 // pred_region
      _
    $region5: #{tpu_custom_call.1} parent=1 // pred_fallthru
      _
    %s11 = smul.u32 0, 8
    %v12 = vlaneseq
    %v13 = vand.u32 %v12, 127
    %v14 = vstv %s11
    %v15 = vadd.s32 %v14, %v13
    %v16 = vld [vmem:[%s0] sm:$0x3]
    %17 = vset.pattern.permute.xlu0 0
    %18 = vperm.xlu0 %17, %v16
    %v19 = vpop.permute.xlu0 %18
    %vm20 = vcmp.ge.s32.totalorder %v15, %v19
    %vm21 = vmpackc.low %vm20, %vm20
    %vm22 = vmpackc.even %vm21, %vm21
    %v23 = vsel %vm22, 16843009, 0
    %vm24 = vcmask 57344
    %vm25 = vsmask.f32 256
    %vm26 = vmand %vm24, %vm25
    %v27 = vld [vmem:[#allocation2] sm:$0x1]
    %v28 = vsel %vm26, %v23, %v27
    %29 = vst [vmem:[#allocation2] sm:$0x1] %v28
    // Predicated region
    $region6: #{tpu_custom_call.1} parent=1 // pred_check
      _
    $region7: #{tpu_custom_call.1} parent=1 // pred_check_branch
      %31 = sbr.rel (0) target = $region9
    $region8: #{tpu_custom_call.1} parent=1 // pred_region
      %s33 = ssub.s32 16, 16
      %34 = vsyncadd [#allocation3], %s33
      %s36 = sshll.u32 [#allocation2], 4
      %s37 = int_to_ptr.vmem [resolvable:$true] %s36
      %39 = dma.vmem_to_hbm [thread:$0]  %s37, 16, %s1, [#allocation3]
    $region9: #{tpu_custom_call.1} parent=1 // pred_fallthru
      _
    // Predicated region
    $region10: #{tpu_custom_call.1} parent=1 // pred_check
      _
    $region11: #{tpu_custom_call.1} parent=1 // pred_check_branch
      %41 = sbr.rel (0) target = $region13
    $region12: #{tpu_custom_call.1} parent=1 // pred_region
      %42 = dma.done [#allocation3], 16
    $region13: #{tpu_custom_call.1} parent=1 // pred_fallthru
      _
    %43 = vsyncpa [#allocation3], 1

</llo_original>
